<compile_context>
chip_gen: v5e
topology: v5e:2x2
jax: 0.10.0
libtpu: 0.0.40
codegen_flags: <defaults>
</compile_context>

<pallas_src>
import functools

import jax
import jax.numpy as jnp
from jax import lax
from jax.experimental import pallas as pl
from jax.experimental.pallas import tpu as pltpu


def _round_up(a, b):
    return (a + b - 1) // b * b


def _hw_params():
    """(vmem_limit_bytes, x_block_bytes) sized per TPU generation."""
    cap = 64 * 1024 * 1024
    try:
        info = pltpu.get_tpu_info()
        cap = int(getattr(info, "vmem_capacity_bytes", cap) or cap)
    except Exception:
        pass
    if cap >= 100 * 1024 * 1024:                  # v5e / v6e: 128 MiB VMEM per core
        return 64 * 1024 * 1024, 8 * 1024 * 1024
    return 48 * 1024 * 1024, 4 * 1024 * 1024      # v7x-class: 64 MiB per core


# ---------------------------------------------------------------------------
# Fused single-pass kernel: stats + conditional affine in one visit of x.
# Blocks: x (N, TC, HW); wv/bv (N, TC, 1).  OOB channels of a ragged last block
# only produce garbage in their own (dropped) output rows, so TC need not divide C.
# ---------------------------------------------------------------------------
def _fused_kernel(x_ref, wv_ref, bv_ref, o_ref, *, eps, count):
    x = x_ref[...].astype(jnp.float32)                       # (N, TC, HW)
    # Reduce over batch first (cheap VALU adds), then over lanes (XLU).
    s_row = jnp.sum(x, axis=0, keepdims=True)                # (1, TC, HW)
    mean = jnp.sum(s_row, axis=2, keepdims=True) / count     # (1, TC, 1)
    xc = x - mean
    q_row = jnp.sum(xc * xc, axis=0, keepdims=True)
    var = jnp.sum(q_row, axis=2, keepdims=True) / count      # centered: better numerics
    inv = lax.rsqrt(var + eps)                                # (1, TC, 1)
    scale = wv_ref[...].astype(jnp.float32) * inv             # (N, TC, 1)
    bias = bv_ref[...].astype(jnp.float32)
    o_ref[...] = (xc * scale + bias).astype(o_ref.dtype)


# ---------------------------------------------------------------------------
# Two-pass streaming fallback.
# ---------------------------------------------------------------------------
def _stats_kernel(x_ref, sum_ref, sq_ref, acc_s_ref, acc_q_ref, *, hw, mask_lanes):
    """Per-row sum / sum(x^2), accumulated across lane tiles (reduction axis last).

    Partial sums stay lane-dense in (TR, 128) VMEM scratch (unmasked stores each
    step); the cross-lane reduction and the narrow (TR, 1) output store happen
    only once per row block, on the last lane step.
    """
    l = pl.program_id(1)
    tr, tl = x_ref.shape

    if tl % 128 == 0:
        @pl.when(l == 0)
        def _():
            acc_s_ref[...] = jnp.zeros_like(acc_s_ref)
            acc_q_ref[...] = jnp.zeros_like(acc_q_ref)

        acc_s = acc_s_ref[...]
        acc_q = acc_q_ref[...]
        for k in range(tl // 128):
            chunk = x_ref[:, k * 128:(k + 1) * 128].astype(jnp.float32)
            if mask_lanes:
                lane_ids = (l * tl + k * 128
                            + lax.broadcasted_iota(jnp.int32, (tr, 128), 1))
                chunk = jnp.where(lane_ids < hw, chunk, 0.0)
            acc_s = acc_s + chunk
            acc_q = acc_q + chunk * chunk
        acc_s_ref[...] = acc_s
        acc_q_ref[...] = acc_q

        @pl.when(l == pl.num_programs(1) - 1)
        def _():
            sum_ref[...] = jnp.sum(acc_s_ref[...], axis=1, keepdims=True)
            sq_ref[...] = jnp.sum(acc_q_ref[...], axis=1, keepdims=True)
    else:
        # Full-extent lane block (tl == hw), single lane step: reduce directly.
        x = x_ref[...].astype(jnp.float32)
        sum_ref[...] = jnp.sum(x, axis=1, keepdims=True)
        sq_ref[...] = jnp.sum(x * x, axis=1, keepdims=True)


def _normalize_kernel(x_ref, scale_ref, shift_ref, o_ref):
    """o = scale * x + shift with per-row (per n,c) scale/shift broadcast over lanes."""
    # TODO(synk): for bf16 inputs on v6e/v7x this could stay in bf16; kept f32 (mem-bound).
    x = x_ref[...].astype(jnp.float32)
    o_ref[...] = (x * scale_ref[...] + shift_ref[...]).astype(o_ref.dtype)


def conditional_norm2d(x, features, fcw_w, fcw_b, fcb_w, fcb_b, eps=1e-5,
                       *, force_two_pass=False, donate_x=False):
    """ConditionalNorm2d forward (BatchNorm2d affine=False, training batch stats).

    x: (N, C, H, W); features: (N, F); fcw_w/fcb_w: (C, F); fcw_b/fcb_b: (C,).
    Set donate_x=True only when the caller donates / no longer needs x.
    """
    eps = float(eps)
    n, c, h, w = x.shape
    hw = h * w
    nc = n * c
    f32 = jnp.float32
    vmem_limit, x_block_bytes = _hw_params()
    aliases = {0: 0} if donate_x else {}

    # Conditional affine from the two Linear layers (tiny (N,F)x(F,C) work).
    feats = features.astype(f32)
    wv = feats @ fcw_w.T.astype(f32) + fcw_b.astype(f32)     # (N, C)
    bv = feats @ fcb_w.T.astype(f32) + fcb_b.astype(f32)     # (N, C)

    # ---- fused single-pass path (x read once, written once) ----------------
    per_ch = n * hw * 4                      # f32 bytes of one channel slice
    tc = None
    if not force_two_pass:
        if c * per_ch <= x_block_bytes:
            tc = c
        else:
            t = (x_block_bytes // per_ch) // 8 * 8
            if t >= 8:
                tc = min(t, c)
    if tc is not None:
        x3 = x.reshape(n, c, hw)
        out3 = pl.pallas_call(
            functools.partial(_fused_kernel, eps=eps, count=float(n * hw)),
            out_shape=jax.ShapeDtypeStruct((n, c, hw), x.dtype),
            grid=(pl.cdiv(c, tc),),
            in_specs=[pl.BlockSpec((n, tc, hw), lambda i: (0, i, 0)),
                      pl.BlockSpec((n, tc, 1), lambda i: (0, i, 0)),
                      pl.BlockSpec((n, tc, 1), lambda i: (0, i, 0))],
            out_specs=pl.BlockSpec((n, tc, hw), lambda i: (0, i, 0)),
            input_output_aliases=aliases,
            compiler_params=pltpu.CompilerParams(
                dimension_semantics=("parallel",),
                vmem_limit_bytes=vmem_limit),
        )(x3, wv.reshape(n, c, 1), bv.reshape(n, c, 1))
        return out3.reshape(n, c, h, w)

    # ---- two-pass streaming fallback ---------------------------------------
    # Rows (N*C) on sublanes, flattened spatial on lanes (lane-dense stores).
    if hw % 128 == 0:
        tl = max(t for t in (4096, 2048, 1024, 512, 256, 128) if hw % t == 0)
    elif hw <= 8192:
        tl = hw                      # full-extent lane block (== array dim: legal)
    else:
        tl = 2048                    # ragged lane edge, masked inside the stats pass
    lane_grid = pl.cdiv(hw, tl)
    mask_lanes = (hw % tl) != 0

    block_elems = x_block_bytes // 4
    tr = max(8, min(512, (block_elems // tl) // 8 * 8))
    if nc <= tr:
        if nc >= 16:
            tr = _round_up((nc + 1) // 2, 8)   # >=2 row tiles keeps both v7x cores busy
        else:
            tr = nc                            # tiny row count: one full-extent block
    row_grid = pl.cdiv(nc, tr)

    x2 = x.reshape(nc, hw)

    # Pass 1: per-(n, c) sum and sum(x^2).  A ragged last row block only corrupts
    # its own out-of-bounds (dropped) rows, so no row mask is needed.
    row_sum, row_sq = pl.pallas_call(
        functools.partial(_stats_kernel, hw=hw, mask_lanes=mask_lanes),
        out_shape=(jax.ShapeDtypeStruct((nc, 1), jnp.float32),
                   jax.ShapeDtypeStruct((nc, 1), jnp.float32)),
        grid=(row_grid, lane_grid),
        in_specs=[pl.BlockSpec((tr, tl), lambda r, l: (r, l))],
        out_specs=(pl.BlockSpec((tr, 1), lambda r, l: (r, 0)),
                   pl.BlockSpec((tr, 1), lambda r, l: (r, 0))),
        scratch_shapes=[pltpu.VMEM((tr, 128), jnp.float32),
                        pltpu.VMEM((tr, 128), jnp.float32)],
        compiler_params=pltpu.CompilerParams(
            dimension_semantics=("parallel", "arbitrary"),
            vmem_limit_bytes=vmem_limit),
    )(x2)

    # Tiny O(N*C) glue: batch stats + fold of the conditional affine.
    count = jnp.float32(n * hw)
    s1 = row_sum.reshape(n, c)
    s2 = row_sq.reshape(n, c)
    mean = s1.sum(axis=0) / count                                  # (C,)
    var = jnp.maximum(s2.sum(axis=0) / count - mean * mean, 0.0)   # biased (BatchNorm)
    inv = lax.rsqrt(var + eps)                                     # (C,)
    scale = (wv * inv[None, :]).reshape(nc, 1)
    shift = (bv - wv * (inv * mean)[None, :]).reshape(nc, 1)

    # Pass 2: o = scale * x + shift (pure streaming FMA, both axes parallel).
    out2 = pl.pallas_call(
        _normalize_kernel,
        out_shape=jax.ShapeDtypeStruct((nc, hw), x.dtype),
        grid=(row_grid, lane_grid),
        in_specs=[pl.BlockSpec((tr, tl), lambda r, l: (r, l)),
                  pl.BlockSpec((tr, 1), lambda r, l: (r, 0)),
                  pl.BlockSpec((tr, 1), lambda r, l: (r, 0))],
        out_specs=pl.BlockSpec((tr, tl), lambda r, l: (r, l)),
        input_output_aliases=aliases,
        compiler_params=pltpu.CompilerParams(
            dimension_semantics=("parallel", "parallel"),
            vmem_limit_bytes=vmem_limit),
    )(x2, scale, shift)

    return out2.reshape(n, c, h, w)


def _reference(x, features, fcw_w, fcw_b, fcb_w, fcb_b, eps=1e-5):
    mean = x.mean(axis=(0, 2, 3), keepdims=True)
    var = ((x - mean) ** 2).mean(axis=(0, 2, 3), keepdims=True)   # biased
    xn = (x - mean) / jnp.sqrt(var + eps)
    w = features @ fcw_w.T + fcw_b
    b = features @ fcb_w.T + fcb_b
    return w[:, :, None, None] * xn + b[:, :, None, None]


if __name__ == "__main__":
    N, C, H, W = 2, 4, 16, 16
    F = 32  # num_features

    key = jax.random.PRNGKey(0)
    kx, kf, k1, k2, k3, k4 = jax.random.split(key, 6)

    x = jax.random.normal(kx, (N, C, H, W), dtype=jnp.float32)
    features = jax.random.normal(kf, (N, F), dtype=jnp.float32)

    # Deterministic parameter init (PyTorch Linear-style uniform bound 1/sqrt(in)).
    bound = 1.0 / jnp.sqrt(jnp.float32(F))
    fcw_w = jax.random.uniform(k1, (C, F), jnp.float32, -bound, bound)
    fcw_b = jax.random.uniform(k2, (C,), jnp.float32, -bound, bound)
    fcb_w = jax.random.uniform(k3, (C, F), jnp.float32, -bound, bound)
    fcb_b = jax.random.uniform(k4, (C,), jnp.float32, -bound, bound)

    ref = _reference(x, features, fcw_w, fcw_b, fcb_w, fcb_b)

    # Fused single-pass path (default for small/medium x).
    out_fused = jax.jit(conditional_norm2d)(x, features, fcw_w, fcw_b, fcb_w, fcb_b)
    out_fused = jax.block_until_ready(out_fused)
    assert out_fused.shape == (N, C, H, W)
    assert jnp.allclose(out_fused, ref, atol=1e-3, rtol=1e-3), "fused path mismatch"

    # Two-pass streaming fallback (large-x path), with x donated and aliased into the output.
    x_copy = jnp.array(x, copy=True)
    two_pass = jax.jit(
        functools.partial(conditional_norm2d, force_two_pass=True, donate_x=True),
        donate_argnums=(0,))
    out_two = two_pass(x_copy, features, fcw_w, fcw_b, fcb_w, fcb_b)
    out_two = jax.block_until_ready(out_two)
    assert out_two.shape == (N, C, H, W)
    assert jnp.allclose(out_two, ref, atol=1e-3, rtol=1e-3), "two-pass path mismatch"

    print("KERNEL_OK")
</pallas_src>

<mosaic_0001>
module attributes {stable_mosaic.version = 11 : i64} {
  func.func @_fused_kernel(%arg0: i32, %arg1: memref<2x4x256xf32, #tpu.memory_space<vmem>>, %arg2: memref<2x4x1xf32, #tpu.memory_space<vmem>>, %arg3: memref<2x4x1xf32, #tpu.memory_space<vmem>>, %arg4: memref<2x4x256xf32, #tpu.memory_space<vmem>>) attributes {dimension_semantics = [#tpu.dimension_semantics<parallel>], iteration_bounds = array<i64: 1>, scalar_prefetch = 0 : i64, scratch_operands = 0 : i64, tpu.core_type = #tpu.core_type<tc>, window_params = [{transform_indices = @transform_0, window_bounds = array<i64: 2, 4, 256>}, {transform_indices = @transform_1, window_bounds = array<i64: 2, 4, 1>}, {transform_indices = @transform_2, window_bounds = array<i64: 2, 4, 1>}, {transform_indices = @transform_3, window_bounds = array<i64: 2, 4, 256>}]} {
    %c0 = arith.constant 0 : index
    %c0_0 = arith.constant 0 : index
    %c0_1 = arith.constant 0 : index
    %0 = vector.load %arg1[%c0, %c0_0, %c0_1] : memref<2x4x256xf32, #tpu.memory_space<vmem>>, vector<2x4x256xf32>
    %cst = arith.constant dense<0.000000e+00> : vector<4x256xf32>
    %1 = vector.multi_reduction <add>, %0, %cst [0] : vector<2x4x256xf32> to vector<4x256xf32>
    %2 = vector.shape_cast %1 : vector<4x256xf32> to vector<1x4x256xf32>
    %cst_2 = arith.constant dense<0.000000e+00> : vector<1x4xf32>
    %3 = vector.multi_reduction <add>, %2, %cst_2 [2] : vector<1x4x256xf32> to vector<1x4xf32>
    %4 = vector.shape_cast %3 : vector<1x4xf32> to vector<1x4x1xf32>
    %cst_3 = arith.constant 5.120000e+02 : f32
    %5 = vector.broadcast %cst_3 : f32 to vector<1x4x1xf32>
    %6 = arith.divf %4, %5 : vector<1x4x1xf32>
    %7 = vector.broadcast %6 : vector<1x4x1xf32> to vector<2x4x256xf32>
    %8 = arith.subf %0, %7 : vector<2x4x256xf32>
    %9 = arith.mulf %8, %8 : vector<2x4x256xf32>
    %cst_4 = arith.constant dense<0.000000e+00> : vector<4x256xf32>
    %10 = vector.multi_reduction <add>, %9, %cst_4 [0] : vector<2x4x256xf32> to vector<4x256xf32>
    %11 = vector.shape_cast %10 : vector<4x256xf32> to vector<1x4x256xf32>
    %cst_5 = arith.constant dense<0.000000e+00> : vector<1x4xf32>
    %12 = vector.multi_reduction <add>, %11, %cst_5 [2] : vector<1x4x256xf32> to vector<1x4xf32>
    %13 = vector.shape_cast %12 : vector<1x4xf32> to vector<1x4x1xf32>
    %cst_6 = arith.constant 5.120000e+02 : f32
    %14 = vector.broadcast %cst_6 : f32 to vector<1x4x1xf32>
    %15 = arith.divf %13, %14 : vector<1x4x1xf32>
    %cst_7 = arith.constant 9.99999974E-6 : f32
    %16 = vector.broadcast %cst_7 : f32 to vector<1x4x1xf32>
    %17 = arith.addf %15, %16 : vector<1x4x1xf32>
    %18 = math.rsqrt %17 : vector<1x4x1xf32>
    %c0_8 = arith.constant 0 : index
    %c0_9 = arith.constant 0 : index
    %c0_10 = arith.constant 0 : index
    %19 = vector.load %arg2[%c0_8, %c0_9, %c0_10] : memref<2x4x1xf32, #tpu.memory_space<vmem>>, vector<2x4x1xf32>
    %20 = vector.broadcast %18 : vector<1x4x1xf32> to vector<2x4x1xf32>
    %21 = arith.mulf %19, %20 : vector<2x4x1xf32>
    %c0_11 = arith.constant 0 : index
    %c0_12 = arith.constant 0 : index
    %c0_13 = arith.constant 0 : index
    %22 = vector.load %arg3[%c0_11, %c0_12, %c0_13] : memref<2x4x1xf32, #tpu.memory_space<vmem>>, vector<2x4x1xf32>
    %23 = vector.broadcast %21 : vector<2x4x1xf32> to vector<2x4x256xf32>
    %24 = arith.mulf %8, %23 : vector<2x4x256xf32>
    %25 = vector.broadcast %22 : vector<2x4x1xf32> to vector<2x4x256xf32>
    %26 = arith.addf %24, %25 : vector<2x4x256xf32>
    %c0_14 = arith.constant 0 : index
    %c0_15 = arith.constant 0 : index
    %c0_16 = arith.constant 0 : index
    %27 = vector.load %arg4[%c0_14, %c0_15, %c0_16] : memref<2x4x256xf32, #tpu.memory_space<vmem>>, vector<2x4x256xf32>
    tpu.vector_store %arg4[%c0_14, %c0_15, %c0_16], %26 {strides = array<i32>} : memref<2x4x256xf32, #tpu.memory_space<vmem>>, vector<2x4x256xf32>,
    return
  }
  func.func @transform_0(%arg0: i32) -> (i32, i32, i32) {
    %c0_i32 = arith.constant 0 : i32
    %c0_i32_0 = arith.constant 0 : i32
    %c0_i32_1 = arith.constant 0 : i32
    return %c0_i32, %arg0, %c0_i32_0 : i32, i32, i32
  }
  func.func @transform_1(%arg0: i32) -> (i32, i32, i32) {
    %c0_i32 = arith.constant 0 : i32
    %c0_i32_0 = arith.constant 0 : i32
    %c0_i32_1 = arith.constant 0 : i32
    return %c0_i32, %arg0, %c0_i32_0 : i32, i32, i32
  }
  func.func @transform_2(%arg0: i32) -> (i32, i32, i32) {
    %c0_i32 = arith.constant 0 : i32
    %c0_i32_0 = arith.constant 0 : i32
    %c0_i32_1 = arith.constant 0 : i32
    return %c0_i32, %arg0, %c0_i32_0 : i32, i32, i32
  }
  func.func @transform_3(%arg0: i32) -> (i32, i32, i32) {
    %c0_i32 = arith.constant 0 : i32
    %c0_i32_0 = arith.constant 0 : i32
    %c0_i32_1 = arith.constant 0 : i32
    return %c0_i32, %arg0, %c0_i32_0 : i32, i32, i32
  }
}

</mosaic_0001>

<llo_original>
// kernel: conditional_norm2d.1
$region0: #{conditional_norm2d.1}
  #allocation0 [shape = 'u32[]', space=smem, size = 0x4, offset = 0x4, fixed_abs, tag = 'smem constant byte address 0x4 - core index']
  #allocation1 [shape = 'u32[72,128]{1,0:T(1,128)}', space=vmem, size = 0x9000, scoped, tag = 'internal scratch']
  %s0 = inlined_call_operand.vmem [shape: f32[2,4,256], index: 0, kind: input, shape index: {}]
  %s1 = inlined_call_operand.vmem [shape: f32[2,4,1], index: 1, kind: input, shape index: {}]
  %s2 = inlined_call_operand.vmem [shape: f32[2,4,1], index: 2, kind: input, shape index: {}]
  %s3 = inlined_call_operand.vmem [shape: f32[2,4,256], index: 3, kind: output, shape index: {}]
  %s4 = sld [smem:[#allocation0]]
  $region22: #{conditional_norm2d.1} parent=0
    _
  %s6 = ssub.s32 1, %s4
  %s7 = scalar_select 0, %s6, %s4
  // Predicated region
  $region2: #{conditional_norm2d.1} parent=0 // pred_check
    _
  $region3: #{conditional_norm2d.1} parent=0 // pred_check_branch
    %9 = sbr.rel (0) target = $region5
  $region4: #{conditional_norm2d.1} parent=0 // pred_region
    _
  $region5: #{conditional_norm2d.1} parent=0 // pred_fallthru
    _
  // Predicated region
  $region6: #{conditional_norm2d.1} parent=0 // pred_check
    _
  $region7: #{conditional_norm2d.1} parent=0 // pred_check_branch
    %11 = sbr.rel (0) target = $region9
  $region8: #{conditional_norm2d.1} parent=0 // pred_region
    _
  $region9: #{conditional_norm2d.1} parent=0 // pred_fallthru
    _
  // Predicated region
  $region10: #{conditional_norm2d.1} parent=0 // pred_check
    _
  $region11: #{conditional_norm2d.1} parent=0 // pred_check_branch
    %13 = sbr.rel (0) target = $region13
  $region12: #{conditional_norm2d.1} parent=0 // pred_region
    _
  $region13: #{conditional_norm2d.1} parent=0 // pred_fallthru
    _
  %v14 = vld [vmem:[%s0] sm:$0xff]
  %v15 = vld [vmem:[%s0 + $0x8] sm:$0xff]
  %18 = vst [vmem:[#allocation1] ss:$2 sm:$0xff] %v14
  %v19 = vld.sshfl [vmem:[#allocation1] sm:$0xff pattern:$0x75316420]
  %v20 = vld.sshfl [vmem:[#allocation1 + $0x8] sm:$0xff pattern:$0x75316420]
  %s21 = scalar_lea.vmem [#allocation1], 16
  %22 = vst [vmem:[%s21] ss:$2 sm:$0xff] %v15
  %v23 = vld.sshfl [vmem:[#allocation1 + $0x10] sm:$0xff pattern:$0x75316420]
  %v24 = vld.sshfl [vmem:[#allocation1 + $0x18] sm:$0xff pattern:$0x75316420]
  %vm29 = vcmask 1043456
  %v30 = vsel %vm29, %v19, 0.0
  %v31 = vsel %vm29, %v23, 0.0
  %v32 = vadd.f32 %v30, %v31
  %v33 = vsel %vm29, %v20, 0.0
  %v34 = vsel %vm29, %v24, 0.0
  %v35 = vadd.f32 %v33, %v34
  %v36 = vsel %vm29, %v32, 0.0
  %v37 = vsel %vm29, %v35, 0.0
  %v38 = vadd.f32 %v36, %v37
  %39 = vadd.xlane.f32.xlu0 %v38
  %v40 = vpop.xlane.xlu0 %39
  %v41 = vrcp.pop 512.0
  %v42 = vmul.f32 512.0, %v41
  %v43 = vsub.f32 1.0, %v42
  %v44 = vmul.f32 %v41, %v43
  %v45 = vadd.f32 %v41, %v44
  %vm46 = vweird.f32 %v41
  %v47 = vsel %vm46, %v41, %v45
  %v48 = vmul.f32 %v40, %v47
  %v51 = vunpack.c.l.s4 839922192
  %v52 = vunpack.c.0.s8 %v51
  %v53 = vperm.slane %v48, %v52
  %v55 = vsub.f32 %v14, %v53
  %v56 = vsub.f32 %v15, %v53
  %v57 = vmul.f32 %v55, %v55
  %v58 = vmul.f32 %v56, %v56
  %61 = vst [vmem:[#allocation1] ss:$2 sm:$0xff] %v57
  %v62 = vld.sshfl [vmem:[#allocation1] sm:$0xff pattern:$0x75316420]
  %v63 = vld.sshfl [vmem:[#allocation1 + $0x8] sm:$0xff pattern:$0x75316420]
  %s64 = scalar_lea.vmem [#allocation1], 16
  %65 = vst [vmem:[%s64] ss:$2 sm:$0xff] %v58
  %v66 = vld.sshfl [vmem:[#allocation1 + $0x10] sm:$0xff pattern:$0x75316420]
  %v67 = vld.sshfl [vmem:[#allocation1 + $0x18] sm:$0xff pattern:$0x75316420]
  %v72 = vsel %vm29, %v62, 0.0
  %v73 = vsel %vm29, %v66, 0.0
  %v74 = vadd.f32 %v72, %v73
  %v75 = vsel %vm29, %v63, 0.0
  %v76 = vsel %vm29, %v67, 0.0
  %v77 = vadd.f32 %v75, %v76
  %v78 = vsel %vm29, %v74, 0.0
  %v79 = vsel %vm29, %v77, 0.0
  %v80 = vadd.f32 %v78, %v79
  %81 = vadd.xlane.f32.xlu0 %v80
  %v82 = vpop.xlane.xlu0 %81
  %v83 = vmul.f32 %v82, %v47
  %v84 = vadd.f32 %v83, 1e-05
  %v85 = vrsqrt.pop %v84
  %v86 = vmul.f32 %v85, %v84
  %v87 = vmul.f32 %v86, %v85
  %v88 = vmul.f32 0.5, %v87
  %v89 = vsub.f32 1.5, %v88
  %v90 = vmul.f32 %v85, %v89
  %vm91 = vweird.f32 %v84
  %vm92 = vweird.f32 %v85
  %vm93 = vmor %vm91, %vm92
  %v94 = vsel %vm93, %v85, %v90
  %v95 = vld [vmem:[%s1] sm:$0xf]
  %v96 = vld [vmem:[%s1 + $0x4] sm:$0xf]
  %v97 = vmul.f32 %v95, %v94
  %v98 = vmul.f32 %v96, %v94
  %v99 = vld [vmem:[%s2] sm:$0xf]
  %v100 = vld [vmem:[%s2 + $0x4] sm:$0xf]
  %102 = vset.pattern.permute.xlu0 0
  %103 = vperm.xlu0 %102, %v97
  %v104 = vpop.permute.xlu0 %103
  %106 = vset.pattern.permute.xlu0 0
  %107 = vperm.xlu0 %106, %v98
  %v108 = vpop.permute.xlu0 %107
  %v110 = vunpack.c.l.s4 839922192
  %v111 = vunpack.c.0.s8 %v110
  %v112 = vperm.slane %v104, %v111
  %v114 = vunpack.c.l.s4 839922192
  %v115 = vunpack.c.0.s8 %v114
  %v116 = vperm.slane %v108, %v115
  %v119 = vmul.f32 %v55, %v112
  %v120 = vmul.f32 %v56, %v116
  %122 = vset.pattern.permute.xlu0 0
  %123 = vperm.xlu0 %122, %v99
  %v124 = vpop.permute.xlu0 %123
  %126 = vset.pattern.permute.xlu0 0
  %127 = vperm.xlu0 %126, %v100
  %v128 = vpop.permute.xlu0 %127
  %v130 = vunpack.c.l.s4 839922192
  %v131 = vunpack.c.0.s8 %v130
  %v132 = vperm.slane %v124, %v131
  %v134 = vunpack.c.l.s4 839922192
  %v135 = vunpack.c.0.s8 %v134
  %v136 = vperm.slane %v128, %v135
  %v139 = vadd.f32 %v119, %v132
  %v140 = vadd.f32 %v120, %v136
  %141 = vst [vmem:[%s3] sm:$0xff] %v139
  %142 = vst [vmem:[%s3 + $0x8] sm:$0xff] %v140
  // Predicated region
  $region14: #{conditional_norm2d.1} parent=0 // pred_check
    _
  $region15: #{conditional_norm2d.1} parent=0 // pred_check_branch
    %144 = sbr.rel (0) target = $region17
  $region16: #{conditional_norm2d.1} parent=0 // pred_region
    _
  $region17: #{conditional_norm2d.1} parent=0 // pred_fallthru
    _
  // Predicated region
  $region18: #{conditional_norm2d.1} parent=0 // pred_check
    _
  $region19: #{conditional_norm2d.1} parent=0 // pred_check_branch
    %146 = sbr.rel (0) target = $region21
  $region20: #{conditional_norm2d.1} parent=0 // pred_region
    _
  $region21: #{conditional_norm2d.1} parent=0 // pred_fallthru
    _

</llo_original>
